<compile_context>
chip_gen: v5e
topology: v5e:2x2
jax: 0.10.0
libtpu: 0.0.40
codegen_flags: <defaults>
</compile_context>

<pallas_src>
import math

import jax
import jax.numpy as jnp
from jax import lax
from jax.experimental import pallas as pl
from jax.experimental.pallas import tpu as pltpu

S = 5          # sequence length (module uses 5x128 inputs)
D = 128        # feature / hidden dim
P_DROP = 0.25  # F.dropout p (training=True is the PyTorch default)

_INV_SCALE = 1.0 / math.sqrt(D)

# EUP approx reciprocal only when actually running on TPU hardware.
_APPROX_RECIP = jax.default_backend() == "tpu"

# dot_general dimension numbers for "x @ W^T" with W kept in (out, in) layout.
_CONTRACT_LAST = (((1,), (1,)), ((), ()))


def _attn_kernel(q_ref, k_ref, v_ref, w_ref, mask_ref, o_ref):
    # w_ref:    (3, D, D) bf16, stacked [Wq, Wk, Wv], PyTorch (out, in) layout.
    # mask_ref: (S, S) f32 dropout mask with values in {0, 1/(1-p)}.

    # Linear projections (no bias) on the MXU at native bf16 rate, f32 acc.
    q = lax.dot_general(q_ref[...].astype(jnp.bfloat16), w_ref[0],
                        _CONTRACT_LAST, preferred_element_type=jnp.float32)
    k = lax.dot_general(k_ref[...].astype(jnp.bfloat16), w_ref[1],
                        _CONTRACT_LAST, preferred_element_type=jnp.float32)

    # qk = q @ k^T, scaled by 1/sqrt(D)
    qk = lax.dot_general(q, k, _CONTRACT_LAST,
                         preferred_element_type=jnp.float32)
    scaled = qk * _INV_SCALE

    # numerically-stable softmax along the last axis
    scaled = scaled - jnp.max(scaled, axis=-1, keepdims=True)
    e = jnp.exp(scaled)
    attn = e * pl.reciprocal(jnp.sum(e, axis=-1, keepdims=True),
                             approx=_APPROX_RECIP)

    # dropout: mask already carries the inverted-keep scale -> one multiply.
    attn = attn * mask_ref[...]

    # (dropout_soft @ value), then the value Linear:  (...) @ Wv^T
    ctx = jnp.dot(attn, v_ref[...], preferred_element_type=jnp.float32)
    o_ref[...] = lax.dot_general(ctx.astype(jnp.bfloat16), w_ref[2],
                                 _CONTRACT_LAST,
                                 preferred_element_type=jnp.float32)


def model2_forward(query, key, value, w_stack, drop_mask):
    """query/key/value: (S, D) f32.
    w_stack:   (3, D, D) bf16 = stacked [Wq, Wk, Wv] in (out, in) layout.
    drop_mask: (S, S) f32 with entries in {0, 1/(1-p)}."""
    vmem = pl.BlockSpec(memory_space=pltpu.MemorySpace.VMEM)
    return pl.pallas_call(
        _attn_kernel,
        out_shape=jax.ShapeDtypeStruct((S, D), jnp.float32),
        in_specs=[vmem, vmem, vmem, vmem, vmem],
        out_specs=vmem,
    )(query, key, value, w_stack, drop_mask)


if __name__ == "__main__":
    root = jax.random.PRNGKey(0)
    k_q, k_k, k_v, k_wq, k_wk, k_wv, k_drop = jax.random.split(root, 7)

    # deterministic example inputs (match the module's 5x128 tensors)
    query = jax.random.normal(k_q, (S, D), dtype=jnp.float32)
    key = jax.random.normal(k_k, (S, D), dtype=jnp.float32)
    value = jax.random.normal(k_v, (S, D), dtype=jnp.float32)

    # Linear(128, 128, bias=False) weights in PyTorch (out, in) layout,
    # uniform(-1/sqrt(in), 1/sqrt(in)) like torch.nn.Linear's default init.
    bound = 1.0 / math.sqrt(D)
    wq = jax.random.uniform(k_wq, (D, D), jnp.float32, -bound, bound)
    wk = jax.random.uniform(k_wk, (D, D), jnp.float32, -bound, bound)
    wv = jax.random.uniform(k_wv, (D, D), jnp.float32, -bound, bound)

    # One-time setup (outside the per-call path): stack + bf16-cast the
    # weights so they reach VMEM via a single contiguous DMA and no per-call
    # transpose ops are emitted (the kernel contracts (out, in) directly).
    w_stack = jnp.stack([wq, wk, wv], axis=0).astype(jnp.bfloat16)

    # Dropout mask precomputed with jax.random (the TPU hardware PRNG has no
    # CPU/interpret lowering); inverse-keep scale 1/(1-p) folded in.
    # TODO(synk): switch to in-kernel pltpu.prng_random_bits when only
    # real-TPU execution matters, to avoid shipping the mask from HBM.
    keep = jax.random.bernoulli(k_drop, 1.0 - P_DROP, (S, S))
    drop_mask = keep.astype(jnp.float32) * (1.0 / (1.0 - P_DROP))

    out = model2_forward(query, key, value, w_stack, drop_mask)
    jax.block_until_ready(out)
    assert out.shape == (S, D) and out.dtype == jnp.float32
    assert bool(jnp.all(jnp.isfinite(out)))
    print("KERNEL_OK")
</pallas_src>

<mosaic_0001>
module attributes {stable_mosaic.version = 11 : i64} {
  func.func @_attn_kernel(%arg0: memref<5x128xf32, #tpu.memory_space<vmem>>, %arg1: memref<5x128xf32, #tpu.memory_space<vmem>>, %arg2: memref<5x128xf32, #tpu.memory_space<vmem>>, %arg3: memref<3x128x128xbf16, #tpu.memory_space<vmem>>, %arg4: memref<5x5xf32, #tpu.memory_space<vmem>>, %arg5: memref<5x128xf32, #tpu.memory_space<vmem>>) attributes {dimension_semantics = [], scalar_prefetch = 0 : i64, scratch_operands = 0 : i64, tpu.core_type = #tpu.core_type<tc>} {
    %c0 = arith.constant 0 : index
    %c0_0 = arith.constant 0 : index
    %0 = vector.load %arg0[%c0, %c0_0] : memref<5x128xf32, #tpu.memory_space<vmem>>, vector<5x128xf32>
    %1 = arith.truncf %0 : vector<5x128xf32> to vector<5x128xbf16>
    %c0_1 = arith.constant 0 : index
    %c0_2 = arith.constant 0 : index
    %c0_3 = arith.constant 0 : index
    %2 = vector.load %arg3[%c0_1, %c0_2, %c0_3] : memref<3x128x128xbf16, #tpu.memory_space<vmem>>, vector<1x128x128xbf16>
    %3 = vector.shape_cast %2 : vector<1x128x128xbf16> to vector<128x128xbf16>
    %cst = arith.constant dense<0.000000e+00> : vector<5x128xf32>
    %4 = tpu.matmul %1, %3, %cst {dimension_numbers = #tpu.dot_dimension_numbers<[1], [1], [0], [0], [0, 0, 1, 0], [], []>} : vector<5x128xbf16>, vector<128x128xbf16>, vector<5x128xf32> -> vector<5x128xf32>
    %c0_4 = arith.constant 0 : index
    %c0_5 = arith.constant 0 : index
    %5 = vector.load %arg1[%c0_4, %c0_5] : memref<5x128xf32, #tpu.memory_space<vmem>>, vector<5x128xf32>
    %6 = arith.truncf %5 : vector<5x128xf32> to vector<5x128xbf16>
    %c1 = arith.constant 1 : index
    %c0_6 = arith.constant 0 : index
    %c0_7 = arith.constant 0 : index
    %7 = vector.load %arg3[%c1, %c0_6, %c0_7] : memref<3x128x128xbf16, #tpu.memory_space<vmem>>, vector<1x128x128xbf16>
    %8 = vector.shape_cast %7 : vector<1x128x128xbf16> to vector<128x128xbf16>
    %cst_8 = arith.constant dense<0.000000e+00> : vector<5x128xf32>
    %9 = tpu.matmul %6, %8, %cst_8 {dimension_numbers = #tpu.dot_dimension_numbers<[1], [1], [0], [0], [0, 0, 1, 0], [], []>} : vector<5x128xbf16>, vector<128x128xbf16>, vector<5x128xf32> -> vector<5x128xf32>
    %cst_9 = arith.constant dense<0.000000e+00> : vector<5x5xf32>
    %10 = tpu.matmul %4, %9, %cst_9 {dimension_numbers = #tpu.dot_dimension_numbers<[1], [1], [0], [0], [0, 0, 1, 0], [], []>} : vector<5x128xf32>, vector<5x128xf32>, vector<5x5xf32> -> vector<5x5xf32>
    %cst_10 = arith.constant 0.0883883461 : f32
    %11 = vector.broadcast %cst_10 : f32 to vector<5x5xf32>
    %12 = arith.mulf %10, %11 : vector<5x5xf32>
    %cst_11 = arith.constant dense<0xFF800000> : vector<5xf32>
    %13 = vector.multi_reduction <maximumf>, %12, %cst_11 [1] : vector<5x5xf32> to vector<5xf32>
    %14 = vector.shape_cast %13 : vector<5xf32> to vector<5x1xf32>
    %15 = vector.broadcast %14 : vector<5x1xf32> to vector<5x5xf32>
    %16 = arith.subf %12, %15 : vector<5x5xf32>
    %17 = math.exp %16 : vector<5x5xf32>
    %cst_12 = arith.constant dense<0.000000e+00> : vector<5xf32>
    %18 = vector.multi_reduction <add>, %17, %cst_12 [1] : vector<5x5xf32> to vector<5xf32>
    %19 = vector.shape_cast %18 : vector<5xf32> to vector<5x1xf32>
    %20 = tpu.reciprocal %19 : vector<5x1xf32> -> vector<5x1xf32>
    %21 = vector.broadcast %20 : vector<5x1xf32> to vector<5x5xf32>
    %22 = arith.mulf %17, %21 : vector<5x5xf32>
    %c0_13 = arith.constant 0 : index
    %c0_14 = arith.constant 0 : index
    %23 = vector.load %arg4[%c0_13, %c0_14] : memref<5x5xf32, #tpu.memory_space<vmem>>, vector<5x5xf32>
    %24 = arith.mulf %22, %23 : vector<5x5xf32>
    %c0_15 = arith.constant 0 : index
    %c0_16 = arith.constant 0 : index
    %25 = vector.load %arg2[%c0_15, %c0_16] : memref<5x128xf32, #tpu.memory_space<vmem>>, vector<5x128xf32>
    %cst_17 = arith.constant dense<0.000000e+00> : vector<5x128xf32>
    %26 = tpu.matmul %24, %25, %cst_17 {dimension_numbers = #tpu.dot_dimension_numbers<[1], [0], [0], [1], [0, 0, 1, 1], [], []>} : vector<5x5xf32>, vector<5x128xf32>, vector<5x128xf32> -> vector<5x128xf32>
    %27 = arith.truncf %26 : vector<5x128xf32> to vector<5x128xbf16>
    %c2 = arith.constant 2 : index
    %c0_18 = arith.constant 0 : index
    %c0_19 = arith.constant 0 : index
    %28 = vector.load %arg3[%c2, %c0_18, %c0_19] : memref<3x128x128xbf16, #tpu.memory_space<vmem>>, vector<1x128x128xbf16>
    %29 = vector.shape_cast %28 : vector<1x128x128xbf16> to vector<128x128xbf16>
    %cst_20 = arith.constant dense<0.000000e+00> : vector<5x128xf32>
    %30 = tpu.matmul %27, %29, %cst_20 {dimension_numbers = #tpu.dot_dimension_numbers<[1], [1], [0], [0], [0, 0, 1, 0], [], []>} : vector<5x128xbf16>, vector<128x128xbf16>, vector<5x128xf32> -> vector<5x128xf32>
    %c0_21 = arith.constant 0 : index
    %c0_22 = arith.constant 0 : index
    %31 = vector.load %arg5[%c0_21, %c0_22] : memref<5x128xf32, #tpu.memory_space<vmem>>, vector<5x128xf32>
    tpu.vector_store %arg5[%c0_21, %c0_22], %30 {strides = array<i32>} : memref<5x128xf32, #tpu.memory_space<vmem>>, vector<5x128xf32>,
    return
  }
}

</mosaic_0001>

<llo_original>
// kernel: tpu_custom_call.1
$region0: #{tpu_custom_call.1}
  #allocation0 [shape = 'u32[]', space=smem, size = 0x4, offset = 0x4, fixed_abs, tag = 'smem constant byte address 0x4 - core index']
  #allocation1 [shape = 'u32[72,128]{1,0:T(1,128)}', space=vmem, size = 0x9000, scoped, tag = 'internal scratch']
  %s0 = inlined_call_operand.hbm [shape: f32[5,128], index: 0, kind: input, shape index: {}]
  %s1 = inlined_call_operand.hbm [shape: f32[5,128], index: 1, kind: input, shape index: {}]
  %s2 = inlined_call_operand.hbm [shape: f32[5,128], index: 2, kind: input, shape index: {}]
  %s3 = inlined_call_operand.hbm [shape: bf16[3,128,128], index: 3, kind: input, shape index: {}]
  %s4 = inlined_call_operand.hbm [shape: f32[5,5], index: 4, kind: input, shape index: {}]
  %s5 = inlined_call_operand.hbm [shape: f32[5,128], index: 5, kind: output, shape index: {}]
  %s6 = sld [smem:[#allocation0]]
  $region50: #{tpu_custom_call.1} parent=0
    _
  %s8 = ssub.s32 1, %s6
  %s9 = scalar_select 0, %s8, %s6
  $region1: #{tpu_custom_call.1} parent=0
    #allocation2 [shape = 'u8[4096]{0}', space=vmem, size = 0x1000, scoped, tag = 'input window, operand 0, single buffered']
    #allocation3 [shape = 's32[1]{0}', space=sflag, size = 0x4, scoped, tag = 'scoped memory for tpu_custom_call.1']
    #allocation4 [shape = 's32[1]{0}', space=sflag, size = 0x4, scoped, tag = 'scoped memory for tpu_custom_call.1']
    #allocation5 [shape = 'u8[4096]{0}', space=vmem, size = 0x1000, scoped, tag = 'input window, operand 1, single buffered']
    #allocation6 [shape = 's32[1]{0}', space=sflag, size = 0x4, scoped, tag = 'scoped memory for tpu_custom_call.1']
    #allocation7 [shape = 'u8[4096]{0}', space=vmem, size = 0x1000, scoped, tag = 'input window, operand 2, single buffered']
    #allocation8 [shape = 'u8[98304]{0}', space=vmem, size = 0x18000, scoped, tag = 'input window, operand 3, single buffered']
    #allocation9 [shape = 's32[1]{0}', space=sflag, size = 0x4, scoped, tag = 'scoped memory for tpu_custom_call.1']
    #allocation10 [shape = 'u8[4096]{0}', space=vmem, size = 0x1000, scoped, tag = 'input window, operand 4, single buffered']
    #allocation11 [shape = 'u8[4096]{0}', space=vmem, size = 0x1000, scoped, tag = 'output window, operand 0, single buffered']
    %10 = vsyncpa [#allocation3], 0
    %11 = vsyncpa [#allocation6], 0
    %12 = vsyncpa [#allocation9], 0
    %13 = vsyncpa [#allocation4], 0
    // Predicated region
    $region2: #{tpu_custom_call.1} parent=1 // pred_check
      _
    $region3: #{tpu_custom_call.1} parent=1 // pred_check_branch
      %15 = sbr.rel (0) target = $region5
    $region4: #{tpu_custom_call.1} parent=1 // pred_region
      %17 = vsyncadd [#allocation3], 0
      %s19 = sshll.u32 %s0, 4
      %s20 = int_to_ptr.hbm [resolvable:$true] %s19
      %s21 = sshll.u32 [#allocation2], 4
      %s22 = int_to_ptr.vmem [resolvable:$true] %s21
      %24 = dma.hbm_to_vmem [thread:$0]  %s20, 128, %s22, [#allocation3]
    $region5: #{tpu_custom_call.1} parent=1 // pred_fallthru
      _
    // Predicated region
    $region6: #{tpu_custom_call.1} parent=1 // pred_check
      _
    $region7: #{tpu_custom_call.1} parent=1 // pred_check_branch
      %26 = sbr.rel (0) target = $region9
    $region8: #{tpu_custom_call.1} parent=1 // pred_region
      %28 = vsyncadd [#allocation6], 0
      %s30 = sshll.u32 %s1, 4
      %s31 = int_to_ptr.hbm [resolvable:$true] %s30
      %s32 = sshll.u32 [#allocation5], 4
      %s33 = int_to_ptr.vmem [resolvable:$true] %s32
      %35 = dma.hbm_to_vmem [thread:$0]  %s31, 128, %s33, [#allocation6]
    $region9: #{tpu_custom_call.1} parent=1 // pred_fallthru
      _
    // Predicated region
    $region10: #{tpu_custom_call.1} parent=1 // pred_check
      _
    $region11: #{tpu_custom_call.1} parent=1 // pred_check_branch
      %37 = sbr.rel (0) target = $region13
    $region12: #{tpu_custom_call.1} parent=1 // pred_region
      %39 = vsyncadd [#allocation6], 0
      %s41 = sshll.u32 %s2, 4
      %s42 = int_to_ptr.hbm [resolvable:$true] %s41
      %s43 = sshll.u32 [#allocation7], 4
      %s44 = int_to_ptr.vmem [resolvable:$true] %s43
      %46 = dma.hbm_to_vmem [thread:$0]  %s42, 128, %s44, [#allocation6]
    $region13: #{tpu_custom_call.1} parent=1 // pred_fallthru
      _
    // Predicated region
    $region14: #{tpu_custom_call.1} parent=1 // pred_check
      _
    $region15: #{tpu_custom_call.1} parent=1 // pred_check_branch
      %48 = sbr.rel (0) target = $region17
    $region16: #{tpu_custom_call.1} parent=1 // pred_region
      %50 = vsyncadd [#allocation9], 0
      %s51 = sshll.u32 %s3, 4
      %s52 = int_to_ptr.hbm [resolvable:$true] %s51
      %s53 = sshll.u32 [#allocation8], 4
      %s54 = int_to_ptr.vmem [resolvable:$true] %s53
      %59 = dma.hbm_to_vmem [thread:$0]  %s52, 3072, %s54, [#allocation9], 64, 64, 4
    $region17: #{tpu_custom_call.1} parent=1 // pred_fallthru
      _
    // Predicated region
    $region18: #{tpu_custom_call.1} parent=1 // pred_check
      _
    $region19: #{tpu_custom_call.1} parent=1 // pred_check_branch
      %61 = sbr.rel (0) target = $region21
    $region20: #{tpu_custom_call.1} parent=1 // pred_region
      %63 = vsyncadd [#allocation9], 0
      %s65 = sshll.u32 %s4, 4
      %s66 = int_to_ptr.hbm [resolvable:$true] %s65
      %s67 = sshll.u32 [#allocation10], 4
      %s68 = int_to_ptr.vmem [resolvable:$true] %s67
      %70 = dma.hbm_to_vmem [thread:$0]  %s66, 128, %s68, [#allocation9]
    $region21: #{tpu_custom_call.1} parent=1 // pred_fallthru
      _
    // Predicated region
    $region22: #{tpu_custom_call.1} parent=1 // pred_check
      _
    $region23: #{tpu_custom_call.1} parent=1 // pred_check_branch
      %72 = sbr.rel (0) target = $region25
    $region24: #{tpu_custom_call.1} parent=1 // pred_region
      %74 = dma.done [#allocation3], 128
    $region25: #{tpu_custom_call.1} parent=1 // pred_fallthru
      _
    // Predicated region
    $region26: #{tpu_custom_call.1} parent=1 // pred_check
      _
    $region27: #{tpu_custom_call.1} parent=1 // pred_check_branch
      %76 = sbr.rel (0) target = $region29
    $region28: #{tpu_custom_call.1} parent=1 // pred_region
      %78 = dma.done [#allocation6], 128
    $region29: #{tpu_custom_call.1} parent=1 // pred_fallthru
      _
    // Predicated region
    $region30: #{tpu_custom_call.1} parent=1 // pred_check
      _
    $region31: #{tpu_custom_call.1} parent=1 // pred_check_branch
      %80 = sbr.rel (0) target = $region33
    $region32: #{tpu_custom_call.1} parent=1 // pred_region
      %82 = dma.done [#allocation6], 128
    $region33: #{tpu_custom_call.1} parent=1 // pred_fallthru
      _
    // Predicated region
    $region34: #{tpu_custom_call.1} parent=1 // pred_check
      _
    $region35: #{tpu_custom_call.1} parent=1 // pred_check_branch
      %84 = sbr.rel (0) target = $region37
    $region36: #{tpu_custom_call.1} parent=1 // pred_region
      %86 = dma.done [#allocation9], 3072
    $region37: #{tpu_custom_call.1} parent=1 // pred_fallthru
      _
    // Predicated region
    $region38: #{tpu_custom_call.1} parent=1 // pred_check
      _
    $region39: #{tpu_custom_call.1} parent=1 // pred_check_branch
      %88 = sbr.rel (0) target = $region41
    $region40: #{tpu_custom_call.1} parent=1 // pred_region
      %90 = dma.done [#allocation9], 128
    $region41: #{tpu_custom_call.1} parent=1 // pred_fallthru
      _
    %v91 = vld [vmem:[#allocation2] sm:$0x1f]
    %v92 = vpack.c.bf16 %v91, %v91
    %v93 = vld [vmem:[#allocation8] sm:$0xf]
    %v94 = vld [vmem:[#allocation8 + $0x4] sm:$0xf]
    %v95 = vld [vmem:[#allocation8 + $0x8] sm:$0xf]
    %v96 = vld [vmem:[#allocation8 + $0xc] sm:$0xf]
    %v97 = vld [vmem:[#allocation8 + $0x10] sm:$0xf]
    %v98 = vld [vmem:[#allocation8 + $0x14] sm:$0xf]
    %v99 = vld [vmem:[#allocation8 + $0x18] sm:$0xf]
    %v100 = vld [vmem:[#allocation8 + $0x1c] sm:$0xf]
    %v101 = vld [vmem:[#allocation8 + $0x20] sm:$0xf]
    %v102 = vld [vmem:[#allocation8 + $0x24] sm:$0xf]
    %v103 = vld [vmem:[#allocation8 + $0x28] sm:$0xf]
    %v104 = vld [vmem:[#allocation8 + $0x2c] sm:$0xf]
    %v105 = vld [vmem:[#allocation8 + $0x30] sm:$0xf]
    %v106 = vld [vmem:[#allocation8 + $0x34] sm:$0xf]
    %v107 = vld [vmem:[#allocation8 + $0x38] sm:$0xf]
    %v108 = vld [vmem:[#allocation8 + $0x3c] sm:$0xf]
    %v125 = vunpack.c.l.b16 %v93
    %v126 = vunpack.c.l.b16 %v94
    %v127 = vunpack.c.l.b16 %v95
    %v128 = vunpack.c.l.b16 %v96
    %v129 = vunpack.c.l.b16 %v97
    %v130 = vunpack.c.l.b16 %v98
    %v131 = vunpack.c.l.b16 %v99
    %v132 = vunpack.c.l.b16 %v100
    %v133 = vunpack.c.l.b16 %v101
    %v134 = vunpack.c.l.b16 %v102
    %v135 = vunpack.c.l.b16 %v103
    %v136 = vunpack.c.l.b16 %v104
    %v137 = vunpack.c.l.b16 %v105
    %v138 = vunpack.c.l.b16 %v106
    %v139 = vunpack.c.l.b16 %v107
    %v140 = vunpack.c.l.b16 %v108
    %v141 = vpack.c.b16 %v126, %v125
    %v142 = vpack.c.b16 %v128, %v127
    %v143 = vpack.c.b16 %v130, %v129
    %v144 = vpack.c.b16 %v132, %v131
    %v145 = vpack.c.b16 %v134, %v133
    %v146 = vpack.c.b16 %v136, %v135
    %v147 = vpack.c.b16 %v138, %v137
    %v148 = vpack.c.b16 %v140, %v139
    %157 = vmatpush.bf16.xpose.msra.mxu0 %v148
    %158 = vmatpush.bf16.xpose.msra.mxu0 %v147
    %159 = vmatpush.bf16.xpose.msra.mxu0 %v146
    %160 = vmatpush.bf16.xpose.msra.mxu0 %v145
    %161 = vmatpush.bf16.xpose.msra.mxu0 %v144
    %162 = vmatpush.bf16.xpose.msra.mxu0 %v143
    %163 = vmatpush.bf16.xpose.msra.mxu0 %v142
    %164 = vmatpush.bf16.xpose.msra.mxu0 %v141
    %165 = vmatmul.bf16.gmra.mxu0 %v92
    %v166 = vpop.f32.mrf.mxu0
    %v167 = vadd.f32 0.0, %v166
    %v168 = vpop.f32.mrf.mxu0
    %169 = vdwg.mxu0
    %v170 = vld [vmem:[#allocation5] sm:$0x1f]
    %v171 = vpack.c.bf16 %v170, %v170
    %s172 = scalar_lea.vmem [#allocation8], 64
    %v173 = vld [vmem:[%s172] sm:$0xf]
    %v174 = vld [vmem:[%s172 + $0x4] sm:$0xf]
    %v175 = vld [vmem:[%s172 + $0x8] sm:$0xf]
    %v176 = vld [vmem:[%s172 + $0xc] sm:$0xf]
    %v177 = vld [vmem:[%s172 + $0x10] sm:$0xf]
    %v178 = vld [vmem:[%s172 + $0x14] sm:$0xf]
    %v179 = vld [vmem:[%s172 + $0x18] sm:$0xf]
    %v180 = vld [vmem:[%s172 + $0x1c] sm:$0xf]
    %v181 = vld [vmem:[%s172 + $0x20] sm:$0xf]
    %v182 = vld [vmem:[%s172 + $0x24] sm:$0xf]
    %v183 = vld [vmem:[%s172 + $0x28] sm:$0xf]
    %v184 = vld [vmem:[%s172 + $0x2c] sm:$0xf]
    %v185 = vld [vmem:[%s172 + $0x30] sm:$0xf]
    %v186 = vld [vmem:[%s172 + $0x34] sm:$0xf]
    %v187 = vld [vmem:[%s172 + $0x38] sm:$0xf]
    %v188 = vld [vmem:[%s172 + $0x3c] sm:$0xf]
    %v205 = vunpack.c.l.b16 %v173
    %v206 = vunpack.c.l.b16 %v174
    %v207 = vunpack.c.l.b16 %v175
    %v208 = vunpack.c.l.b16 %v176
    %v209 = vunpack.c.l.b16 %v177
    %v210 = vunpack.c.l.b16 %v178
    %v211 = vunpack.c.l.b16 %v179
    %v212 = vunpack.c.l.b16 %v180
    %v213 = vunpack.c.l.b16 %v181
    %v214 = vunpack.c.l.b16 %v182
    %v215 = vunpack.c.l.b16 %v183
    %v216 = vunpack.c.l.b16 %v184
    %v217 = vunpack.c.l.b16 %v185
    %v218 = vunpack.c.l.b16 %v186
    %v219 = vunpack.c.l.b16 %v187
    %v220 = vunpack.c.l.b16 %v188
    %v221 = vpack.c.b16 %v206, %v205
    %v222 = vpack.c.b16 %v208, %v207
    %v223 = vpack.c.b16 %v210, %v209
    %v224 = vpack.c.b16 %v212, %v211
    %v225 = vpack.c.b16 %v214, %v213
    %v226 = vpack.c.b16 %v216, %v215
    %v227 = vpack.c.b16 %v218, %v217
    %v228 = vpack.c.b16 %v220, %v219
    %237 = vmatpush.bf16.xpose.msra.mxu0 %v228
    %238 = vmatpush.bf16.xpose.msra.mxu0 %v227
    %239 = vmatpush.bf16.xpose.msra.mxu0 %v226
    %240 = vmatpush.bf16.xpose.msra.mxu0 %v225
    %241 = vmatpush.bf16.xpose.msra.mxu0 %v224
    %242 = vmatpush.bf16.xpose.msra.mxu0 %v223
    %243 = vmatpush.bf16.xpose.msra.mxu0 %v222
    %244 = vmatpush.bf16.xpose.msra.mxu0 %v221
    %245 = vmatmul.bf16.gmra.mxu0 %v171
    %v246 = vpop.f32.mrf.mxu0
    %v247 = vadd.f32 0.0, %v246
    %v248 = vpop.f32.mrf.mxu0
    %249 = vdwg.mxu0
    %250 = vmatpush.xpose.msra.mxu0 0.0
    %251 = vmatpush.xpose.msra.mxu0 0.0
    %252 = vmatpush.xpose.msra.mxu0 0.0
    %253 = vmatpush.xpose.msra.mxu0 0.0
    %254 = vmatpush.xpose.msra.mxu0 0.0
    %255 = vmatpush.xpose.msra.mxu0 0.0
    %256 = vmatpush.xpose.msra.mxu0 0.0
    %257 = vmatpush.xpose.msra.mxu0 0.0
    %258 = vmatpush.xpose.msra.mxu0 0.0
    %259 = vmatpush.xpose.msra.mxu0 0.0
    %260 = vmatpush.xpose.msra.mxu0 0.0
    %261 = vmatpush.xpose.msra.mxu0 0.0
    %262 = vmatpush.xpose.msra.mxu0 0.0
    %263 = vmatpush.xpose.msra.mxu0 0.0
    %264 = vmatpush.xpose.msra.mxu0 0.0
    %265 = vmatpush.xpose.msra.mxu0 %v247
    %266 = vmatmul.f32.gmra.mxu0 %v167
    %v267 = vpop.f32.mrf.mxu0
    %v268 = vadd.f32 0.0, %v267
    %269 = vdwg.mxu0
    %v270 = vmul.f32 %v268, 0.088388346
    %vm271 = vcmask 36864
    %v272 = vsel %vm271, %v270, -inf
    %273 = vmax.xlane.f32.xlu0 %v272
    %v274 = vpop.xlane.xlu0 %273
    %v275 = vsub.f32 %v270, %v274
    %v276 = vmul.f32 %v275, 1.442695
    %v277 = vpow.pop %v276
    %v278 = vsel %vm271, %v277, 0.0
    %279 = vadd.xlane.f32.xlu0 %v278
    %v280 = vpop.xlane.xlu0 %279
    %v281 = vrcp.pop %v280
    %v282 = vmul.f32 %v280, %v281
    %v283 = vsub.f32 1.0, %v282
    %v284 = vmul.f32 %v281, %v283
    %v285 = vadd.f32 %v281, %v284
    %vm286 = vweird.f32 %v280
    %vm287 = vweird.f32 %v281
    %vm288 = vmor %vm286, %vm287
    %v289 = vsel %vm288, %v281, %v285
    %v290 = vand.u32 2147483647, %v280
    %vm291 = vcmp.eq.f32.partialorder %v290, 8.507059e+37
    %v292 = vand.u32 %v280, 2147483648
    %v293 = vor.u32 1.1754944e-38, %v292
    %v294 = vsel %vm291, %v293, %v289
    %v295 = vmul.f32 %v277, %v294
    %v296 = vld [vmem:[#allocation10] sm:$0x1f]
    %v297 = vmul.f32 %v295, %v296
    %v298 = vld [vmem:[#allocation7] sm:$0x1f]
    %vm299 = vcmask 39936
    %v301 = vsel %vm299, %v297, 0
    %vm303 = vcmask 1044480
    %v305 = vsel %vm303, %v298, 0
    %307 = vmatpush.msra.mxu0 0.0
    %308 = vmatpush.msra.mxu0 0.0
    %309 = vmatpush.msra.mxu0 0.0
    %310 = vmatpush.msra.mxu0 0.0
    %311 = vmatpush.msra.mxu0 0.0
    %312 = vmatpush.msra.mxu0 0.0
    %313 = vmatpush.msra.mxu0 0.0
    %314 = vmatpush.msra.mxu0 0.0
    %315 = vmatpush.msra.mxu0 0.0
    %316 = vmatpush.msra.mxu0 0.0
    %317 = vmatpush.msra.mxu0 0.0
    %318 = vmatpush.msra.mxu0 0.0
    %319 = vmatpush.msra.mxu0 0.0
    %320 = vmatpush.msra.mxu0 0.0
    %321 = vmatpush.msra.mxu0 0.0
    %322 = vmatpush.msra.mxu0 %v305
    %323 = vmatmul.f32.gmra.mxu0 %v301
    %v324 = vpop.f32.mrf.mxu0
    %v325 = vadd.f32 0.0, %v324
    %326 = vdwg.mxu0
    %v327 = vpack.c.bf16 %v325, %v325
    %s328 = scalar_lea.vmem [#allocation8], 128
    %v329 = vld [vmem:[%s328] sm:$0xf]
    %v330 = vld [vmem:[%s328 + $0x4] sm:$0xf]
    %v331 = vld [vmem:[%s328 + $0x8] sm:$0xf]
    %v332 = vld [vmem:[%s328 + $0xc] sm:$0xf]
    %v333 = vld [vmem:[%s328 + $0x10] sm:$0xf]
    %v334 = vld [vmem:[%s328 + $0x14] sm:$0xf]
    %v335 = vld [vmem:[%s328 + $0x18] sm:$0xf]
    %v336 = vld [vmem:[%s328 + $0x1c] sm:$0xf]
    %v337 = vld [vmem:[%s328 + $0x20] sm:$0xf]
    %v338 = vld [vmem:[%s328 + $0x24] sm:$0xf]
    %v339 = vld [vmem:[%s328 + $0x28] sm:$0xf]
    %v340 = vld [vmem:[%s328 + $0x2c] sm:$0xf]
    %v341 = vld [vmem:[%s328 + $0x30] sm:$0xf]
    %v342 = vld [vmem:[%s328 + $0x34] sm:$0xf]
    %v343 = vld [vmem:[%s328 + $0x38] sm:$0xf]
    %v344 = vld [vmem:[%s328 + $0x3c] sm:$0xf]
    %v361 = vunpack.c.l.b16 %v329
    %v362 = vunpack.c.l.b16 %v330
    %v363 = vunpack.c.l.b16 %v331
    %v364 = vunpack.c.l.b16 %v332
    %v365 = vunpack.c.l.b16 %v333
    %v366 = vunpack.c.l.b16 %v334
    %v367 = vunpack.c.l.b16 %v335
    %v368 = vunpack.c.l.b16 %v336
    %v369 = vunpack.c.l.b16 %v337
    %v370 = vunpack.c.l.b16 %v338
    %v371 = vunpack.c.l.b16 %v339
    %v372 = vunpack.c.l.b16 %v340
    %v373 = vunpack.c.l.b16 %v341
    %v374 = vunpack.c.l.b16 %v342
    %v375 = vunpack.c.l.b16 %v343
    %v376 = vunpack.c.l.b16 %v344
    %v377 = vpack.c.b16 %v362, %v361
    %v378 = vpack.c.b16 %v364, %v363
    %v379 = vpack.c.b16 %v366, %v365
    %v380 = vpack.c.b16 %v368, %v367
    %v381 = vpack.c.b16 %v370, %v369
    %v382 = vpack.c.b16 %v372, %v371
    %v383 = vpack.c.b16 %v374, %v373
    %v384 = vpack.c.b16 %v376, %v375
    %393 = vmatpush.bf16.xpose.msra.mxu0 %v384
    %394 = vmatpush.bf16.xpose.msra.mxu0 %v383
    %395 = vmatpush.bf16.xpose.msra.mxu0 %v382
    %396 = vmatpush.bf16.xpose.msra.mxu0 %v381
    %397 = vmatpush.bf16.xpose.msra.mxu0 %v380
    %398 = vmatpush.bf16.xpose.msra.mxu0 %v379
    %399 = vmatpush.bf16.xpose.msra.mxu0 %v378
    %400 = vmatpush.bf16.xpose.msra.mxu0 %v377
    %401 = vmatmul.bf16.gmra.mxu0 %v327
    %v402 = vpop.f32.mrf.mxu0
    %v403 = vadd.f32 0.0, %v402
    %v404 = vpop.f32.mrf.mxu0
    %405 = vdwg.mxu0
    %406 = vst [vmem:[#allocation11] sm:$0x1f] %v403
    // Predicated region
    $region42: #{tpu_custom_call.1} parent=1 // pred_check
      _
    $region43: #{tpu_custom_call.1} parent=1 // pred_check_branch
      %408 = sbr.rel (0) target = $region45
    $region44: #{tpu_custom_call.1} parent=1 // pred_region
      %410 = vsyncadd [#allocation4], 0
      %s412 = sshll.u32 [#allocation11], 4
      %s413 = int_to_ptr.vmem [resolvable:$true] %s412
      %s414 = sshll.u32 %s5, 4
      %s415 = int_to_ptr.hbm [resolvable:$true] %s414
      %417 = dma.vmem_to_hbm [thread:$0]  %s413, 128, %s415, [#allocation4]
    $region45: #{tpu_custom_call.1} parent=1 // pred_fallthru
      _
    // Predicated region
    $region46: #{tpu_custom_call.1} parent=1 // pred_check
      _
    $region47: #{tpu_custom_call.1} parent=1 // pred_check_branch
      %419 = sbr.rel (0) target = $region49
    $region48: #{tpu_custom_call.1} parent=1 // pred_region
      %421 = dma.done [#allocation4], 128
    $region49: #{tpu_custom_call.1} parent=1 // pred_fallthru
      _
    %422 = vsyncpa [#allocation3], 1
    %423 = vsyncpa [#allocation6], 1
    %424 = vsyncpa [#allocation9], 1
    %425 = vsyncpa [#allocation4], 1

</llo_original>
